<compile_context>
chip_gen: v7x
topology: tpu7x:2x2x1
jax: 0.10.0
libtpu: 0.0.40
codegen_flags: <defaults>
</compile_context>

<pallas_src>
import jax
import jax.numpy as jnp
from jax import lax
from jax.experimental import pallas as pl
from jax.experimental.pallas import tpu as pltpu


def attention_kernel(text_ref, w_ref, b_ref, local_ref, out_ref):
    """Fused: linear projection -> scores -> softmax -> weighted sum.

    text_ref  : (bm, T)  f32   VMEM   (batched text queries, cast to bf16 in-kernel)
    w_ref     : (T, L)   bf16  VMEM   (Linear weight, pre-transposed)
    b_ref     : (1, L)   f32   VMEM   (Linear bias)
    local_ref : (N, L)   f32   VMEM   (local features, cast to bf16 in-kernel)
    out_ref   : (bm, L)  f32   VMEM   (lane-dense output)
    """
    # In-kernel casts (VPU, free) replace wrapper-side astype XLA ops.
    x = text_ref[...].astype(jnp.bfloat16)            # (bm, T)
    loc = local_ref[...].astype(jnp.bfloat16)         # (N, L)

    # Linear: h = text @ W^T + b  -> (bm, L); bf16 MXU, f32 accumulation.
    h = jnp.dot(x, w_ref[...], preferred_element_type=jnp.float32) + b_ref[...]

    # scores = h @ loc^T -> (bm, N); contract the feature (lane) dims, bf16 operands.
    scores = lax.dot_general(
        h.astype(jnp.bfloat16), loc, (((1,), (1,)), ((), ())),
        preferred_element_type=jnp.float32)

    # Numerically-stable softmax over N with deferred normalization (f32 throughout).
    m = jnp.max(scores, axis=-1, keepdims=True)
    e = jnp.exp(scores - m)                                              # (bm, N)
    weighted = jnp.dot(e.astype(jnp.bfloat16), loc,
                       preferred_element_type=jnp.float32)               # (bm, L)
    inv_denom = pl.reciprocal(jnp.sum(e, axis=-1, keepdims=True), approx=True)

    out_ref[...] = (weighted * inv_denom).astype(out_ref.dtype)


def make_attention(w, b, *, block_b=128):
    """Build the forward fn.

    w: (L, T) torch-layout Linear weight, b: (L,) bias. Weight prep (transpose + bf16
    cast) happens exactly once here, not per call.
    Returns forward(text (B, T) f32, local (1, N, L) f32) -> (1, B, L) f32.
    """
    L, T = w.shape
    w_t = jnp.asarray(w, jnp.float32).T.astype(jnp.bfloat16)   # (T, L), stored bf16
    b2 = jnp.asarray(b, jnp.float32).reshape(1, L)              # (1, L)

    vmem = pl.BlockSpec(memory_space=pltpu.MemorySpace.VMEM)

    @jax.jit
    def forward(text_features, local_features):
        B = text_features.shape[0]
        assert local_features.shape[0] == 1, "local-feature batch must be 1"
        assert local_features.shape[-1] == L and text_features.shape[1] == T
        N = local_features.shape[-2]

        # Metadata-only: drop the size-1 batch dim so the kernel refs are all 2-D.
        loc2d = local_features.reshape(N, L)
        text_f32 = text_features.astype(jnp.float32)

        cost = pl.CostEstimate(
            flops=2 * B * (T * L + 2 * N * L),
            transcendentals=B * (N + 1),                        # exp + reciprocal
            bytes_accessed=B * T * 4 + T * L * 2 + L * 4 + N * L * 4 + B * L * 4,
        )
        out_shape = jax.ShapeDtypeStruct((B, L), jnp.float32)

        if B >= 2 * block_b and B % block_b == 0:
            # Large-batch path: split B across grid steps (and across the v7x
            # TensorCores via "parallel"); the weight block index is constant so
            # W stays resident in VMEM across steps.
            out2d = pl.pallas_call(
                attention_kernel,
                out_shape=out_shape,
                grid_spec=pltpu.PrefetchScalarGridSpec(
                    num_scalar_prefetch=0,
                    grid=(B // block_b,),
                    in_specs=[
                        pl.BlockSpec((block_b, T), lambda i: (i, 0)),  # text
                        pl.BlockSpec((T, L), lambda i: (0, 0)),        # W^T (bf16)
                        pl.BlockSpec((1, L), lambda i: (0, 0)),        # bias
                        pl.BlockSpec((N, L), lambda i: (0, 0)),        # local feats
                    ],
                    out_specs=pl.BlockSpec((block_b, L), lambda i: (i, 0)),
                ),
                compiler_params=pltpu.CompilerParams(
                    dimension_semantics=("parallel",)),
                cost_estimate=cost,
            )(text_f32, w_t, b2, loc2d)
        else:
            # Small-batch path: single grid-less launch, whole problem in VMEM.
            out2d = pl.pallas_call(
                attention_kernel,
                out_shape=out_shape,
                in_specs=[vmem, vmem, vmem, vmem],
                out_specs=vmem,
                cost_estimate=cost,
            )(text_f32, w_t, b2, loc2d)

        # Match the torch matmul-broadcast output shape (1, B, L); metadata-only.
        return out2d.reshape(1, B, L)

    return forward


def attention_reference(text_features, local_features, w_t_bf16, b):
    """Pure-JAX reference using the same bf16 operand / f32 accumulate staging."""
    x = text_features.astype(jnp.bfloat16)
    h = jnp.dot(x, w_t_bf16, preferred_element_type=jnp.float32) + b.reshape(1, -1)
    loc = local_features.reshape(-1, local_features.shape[-1]).astype(jnp.bfloat16)
    scores = jnp.dot(h.astype(jnp.bfloat16), loc.T,
                     preferred_element_type=jnp.float32)
    m = scores.max(-1, keepdims=True)
    e = jnp.exp(scores - m)
    weighted = jnp.dot(e.astype(jnp.bfloat16), loc,
                       preferred_element_type=jnp.float32)
    out = weighted / e.sum(-1, keepdims=True)
    return out.reshape(1, text_features.shape[0], -1)


if __name__ == "__main__":
    text_feature_dim = 256
    local_feature_dim = 128
    num_locals = 10
    batch = 8            # small-batch (grid-less) path
    big_batch = 256      # large-batch (gridded, megacore-parallel) path

    key = jax.random.PRNGKey(0)
    k_text, k_local, k_w, k_b, k_big = jax.random.split(key, 5)

    text_features = jax.random.normal(k_text, (batch, text_feature_dim), jnp.float32)
    big_text = jax.random.normal(k_big, (big_batch, text_feature_dim), jnp.float32)
    local_features = jax.random.normal(
        k_local, (1, num_locals, local_feature_dim), jnp.float32)

    # Deterministic "Linear(text_feature_dim, local_feature_dim)" parameters.
    bound = 1.0 / (text_feature_dim ** 0.5)
    w = jax.random.uniform(k_w, (local_feature_dim, text_feature_dim),
                           jnp.float32, -bound, bound)
    b = jax.random.uniform(k_b, (local_feature_dim,), jnp.float32, -bound, bound)

    attn_fn = make_attention(w, b)
    w_t_bf16 = jnp.asarray(w, jnp.float32).T.astype(jnp.bfloat16)

    # Small-batch path (B = 8 queries per launch).
    out = jax.block_until_ready(attn_fn(text_features, local_features))
    ref = attention_reference(text_features, local_features, w_t_bf16, b)
    assert out.shape == (1, batch, local_feature_dim)
    assert jnp.allclose(out, ref, rtol=5e-3, atol=5e-3), "batched mismatch vs reference"

    # Module-exact B = 1 case (same shapes as the original PyTorch snippet).
    out1 = jax.block_until_ready(attn_fn(text_features[:1], local_features))
    ref1 = attention_reference(text_features[:1], local_features, w_t_bf16, b)
    assert out1.shape == (1, 1, local_feature_dim)
    assert jnp.allclose(out1, ref1, rtol=5e-3, atol=5e-3), "B=1 mismatch vs reference"

    # Large-batch path (B = 256 -> 1-D parallel grid over B).
    outb = jax.block_until_ready(attn_fn(big_text, local_features))
    refb = attention_reference(big_text, local_features, w_t_bf16, b)
    assert outb.shape == (1, big_batch, local_feature_dim)
    assert jnp.allclose(outb, refb, rtol=5e-3, atol=5e-3), "large-B mismatch vs reference"

    print("KERNEL_OK")
</pallas_src>

<mosaic_0001>
module attributes {stable_mosaic.version = 11 : i64} {
  func.func @attention_kernel(%arg0: memref<8x256xf32, #tpu.memory_space<vmem>>, %arg1: memref<256x128xbf16, #tpu.memory_space<vmem>>, %arg2: memref<1x128xf32, #tpu.memory_space<vmem>>, %arg3: memref<10x128xf32, #tpu.memory_space<vmem>>, %arg4: memref<8x128xf32, #tpu.memory_space<vmem>>) attributes {dimension_semantics = [], scalar_prefetch = 0 : i64, scratch_operands = 0 : i64, tpu.core_type = #tpu.core_type<tc>} {
    %c0 = arith.constant 0 : index
    %c0_0 = arith.constant 0 : index
    %0 = vector.load %arg0[%c0, %c0_0] : memref<8x256xf32, #tpu.memory_space<vmem>>, vector<8x256xf32>
    %1 = arith.truncf %0 : vector<8x256xf32> to vector<8x256xbf16>
    %c0_1 = arith.constant 0 : index
    %c0_2 = arith.constant 0 : index
    %2 = vector.load %arg3[%c0_1, %c0_2] : memref<10x128xf32, #tpu.memory_space<vmem>>, vector<10x128xf32>
    %3 = arith.truncf %2 : vector<10x128xf32> to vector<10x128xbf16>
    %c0_3 = arith.constant 0 : index
    %c0_4 = arith.constant 0 : index
    %4 = vector.load %arg1[%c0_3, %c0_4] : memref<256x128xbf16, #tpu.memory_space<vmem>>, vector<256x128xbf16>
    %cst = arith.constant dense<0.000000e+00> : vector<8x128xf32>
    %5 = tpu.matmul %1, %4, %cst {dimension_numbers = #tpu.dot_dimension_numbers<[1], [0], [0], [1], [0, 0, 1, 1], [], []>} : vector<8x256xbf16>, vector<256x128xbf16>, vector<8x128xf32> -> vector<8x128xf32>
    %c0_5 = arith.constant 0 : index
    %c0_6 = arith.constant 0 : index
    %6 = vector.load %arg2[%c0_5, %c0_6] : memref<1x128xf32, #tpu.memory_space<vmem>>, vector<1x128xf32>
    %7 = vector.broadcast %6 : vector<1x128xf32> to vector<8x128xf32>
    %8 = arith.addf %5, %7 : vector<8x128xf32>
    %9 = arith.truncf %8 : vector<8x128xf32> to vector<8x128xbf16>
    %cst_7 = arith.constant dense<0.000000e+00> : vector<8x10xf32>
    %10 = tpu.matmul %9, %3, %cst_7 {dimension_numbers = #tpu.dot_dimension_numbers<[1], [1], [0], [0], [0, 0, 1, 0], [], []>} : vector<8x128xbf16>, vector<10x128xbf16>, vector<8x10xf32> -> vector<8x10xf32>
    %cst_8 = arith.constant dense<0xFF800000> : vector<8xf32>
    %11 = vector.multi_reduction <maximumf>, %10, %cst_8 [1] : vector<8x10xf32> to vector<8xf32>
    %12 = vector.shape_cast %11 : vector<8xf32> to vector<8x1xf32>
    %13 = vector.broadcast %12 : vector<8x1xf32> to vector<8x10xf32>
    %14 = arith.subf %10, %13 : vector<8x10xf32>
    %15 = math.exp %14 : vector<8x10xf32>
    %16 = arith.truncf %15 : vector<8x10xf32> to vector<8x10xbf16>
    %cst_9 = arith.constant dense<0.000000e+00> : vector<8x128xf32>
    %17 = tpu.matmul %16, %3, %cst_9 {dimension_numbers = #tpu.dot_dimension_numbers<[1], [0], [0], [1], [0, 0, 1, 1], [], []>} : vector<8x10xbf16>, vector<10x128xbf16>, vector<8x128xf32> -> vector<8x128xf32>
    %cst_10 = arith.constant dense<0.000000e+00> : vector<8xf32>
    %18 = vector.multi_reduction <add>, %15, %cst_10 [1] : vector<8x10xf32> to vector<8xf32>
    %19 = vector.shape_cast %18 : vector<8xf32> to vector<8x1xf32>
    %20 = tpu.reciprocal %19 {approx = true} : vector<8x1xf32> -> vector<8x1xf32>
    %21 = vector.broadcast %20 : vector<8x1xf32> to vector<8x128xf32>
    %22 = arith.mulf %17, %21 : vector<8x128xf32>
    %c0_11 = arith.constant 0 : index
    %c0_12 = arith.constant 0 : index
    %23 = vector.load %arg4[%c0_11, %c0_12] : memref<8x128xf32, #tpu.memory_space<vmem>>, vector<8x128xf32>
    tpu.vector_store %arg4[%c0_11, %c0_12], %22 {strides = array<i32>} : memref<8x128xf32, #tpu.memory_space<vmem>>, vector<8x128xf32>,
    return
  }
}

</mosaic_0001>

<llo_original>
// kernel: forward.1
$region0: #{forward.1}
  #allocation0 [shape = 'u32[]', space=smem, size = 0x4, offset = 0x4, fixed_abs, tag = 'smem constant byte address 0x4 - core index']
  #allocation1 [shape = 'u32[144,128]{1,0:T(1,128)}', space=vmem, size = 0x12000, scoped, tag = 'internal scratch']
  %s0 = inlined_call_operand.vmem [shape: f32[8,256], index: 0, kind: input, shape index: {}]
  %s1 = inlined_call_operand.hbm [shape: bf16[256,128], index: 1, kind: input, shape index: {}]
  %s2 = inlined_call_operand.vmem [shape: f32[1,128], index: 2, kind: input, shape index: {}]
  %s3 = inlined_call_operand.vmem [shape: f32[10,128], index: 3, kind: input, shape index: {}]
  %s4 = inlined_call_operand.hbm [shape: f32[8,128], index: 4, kind: output, shape index: {}]
  %s5 = sld [smem:[#allocation0]]
  $region30: #{forward.1} parent=0
    _
  %s7 = ssub.s32 1, %s5
  %s8 = scalar_select 0, %s7, %s5
  $region1: #{forward.1} parent=0
    #allocation2 [shape = 'u8[65536]{0}', space=vmem, size = 0x10000, scoped, tag = 'input window, operand 1, single buffered']
    #allocation3 [shape = 's32[1]{0}', space=sflag, size = 0x4, scoped, tag = 'scoped memory for forward.1']
    #allocation4 [shape = 's32[1]{0}', space=sflag, size = 0x4, scoped, tag = 'scoped memory for forward.1']
    #allocation5 [shape = 'u8[4096]{0}', space=vmem, size = 0x1000, scoped, tag = 'output window, operand 0, single buffered']
    %9 = vsyncpa [#allocation3], 0
    %10 = vsyncpa [#allocation4], 0
    // Predicated region
    $region2: #{forward.1} parent=1 // pred_check
      _
    $region3: #{forward.1} parent=1 // pred_check_branch
      %12 = sbr.rel (0) target = $region5
    $region4: #{forward.1} parent=1 // pred_region
      _
    $region5: #{forward.1} parent=1 // pred_fallthru
      _
    // Predicated region
    $region6: #{forward.1} parent=1 // pred_check
      _
    $region7: #{forward.1} parent=1 // pred_check_branch
      %14 = sbr.rel (0) target = $region9
    $region8: #{forward.1} parent=1 // pred_region
      %s16 = ssub.s32 2048, 2048
      %17 = vsyncadd [#allocation3], %s16
      %s18 = sshll.u32 [#allocation2], 4
      %s19 = int_to_ptr.vmem [resolvable:$true] %s18
      %24 = dma.hbm_to_vmem [thread:$0]  %s1, 2048, %s19, [#allocation3], 64, 64, 4
    $region9: #{forward.1} parent=1 // pred_fallthru
      _
    // Predicated region
    $region10: #{forward.1} parent=1 // pred_check
      _
    $region11: #{forward.1} parent=1 // pred_check_branch
      %26 = sbr.rel (0) target = $region13
    $region12: #{forward.1} parent=1 // pred_region
      _
    $region13: #{forward.1} parent=1 // pred_fallthru
      _
    // Predicated region
    $region14: #{forward.1} parent=1 // pred_check
      _
    $region15: #{forward.1} parent=1 // pred_check_branch
      %28 = sbr.rel (0) target = $region17
    $region16: #{forward.1} parent=1 // pred_region
      _
    $region17: #{forward.1} parent=1 // pred_fallthru
      _
    // Predicated region
    $region18: #{forward.1} parent=1 // pred_check
      _
    $region19: #{forward.1} parent=1 // pred_check_branch
      %30 = sbr.rel (0) target = $region21
    $region20: #{forward.1} parent=1 // pred_region
      %31 = dma.done [#allocation3], 2048
    $region21: #{forward.1} parent=1 // pred_fallthru
      _
    %v33 = vld [vmem:[%s0] sm:$0xff]
    %v34 = vld [vmem:[%s0 + $0x8] sm:$0xff]
    %v35 = vpack.c.bf16 %v33, %v33
    %v36 = vpack.c.bf16 %v34, %v34
    %v37 = vld [vmem:[%s3] sm:$0xff]
    %v38 = vld [vmem:[%s3 + $0x8] sm:$0x3]
    %v39 = vpack.c.bf16 %v38, %v37
    %v40 = vld [vmem:[#allocation2] sm:$0xf]
    %v41 = vld [vmem:[#allocation2 + $0x4] sm:$0xf]
    %v42 = vld [vmem:[#allocation2 + $0x8] sm:$0xf]
    %v43 = vld [vmem:[#allocation2 + $0xc] sm:$0xf]
    %v44 = vld [vmem:[#allocation2 + $0x10] sm:$0xf]
    %v45 = vld [vmem:[#allocation2 + $0x14] sm:$0xf]
    %v46 = vld [vmem:[#allocation2 + $0x18] sm:$0xf]
    %v47 = vld [vmem:[#allocation2 + $0x1c] sm:$0xf]
    %v48 = vld [vmem:[#allocation2 + $0x20] sm:$0xf]
    %v49 = vld [vmem:[#allocation2 + $0x24] sm:$0xf]
    %v50 = vld [vmem:[#allocation2 + $0x28] sm:$0xf]
    %v51 = vld [vmem:[#allocation2 + $0x2c] sm:$0xf]
    %v52 = vld [vmem:[#allocation2 + $0x30] sm:$0xf]
    %v53 = vld [vmem:[#allocation2 + $0x34] sm:$0xf]
    %v54 = vld [vmem:[#allocation2 + $0x38] sm:$0xf]
    %v55 = vld [vmem:[#allocation2 + $0x3c] sm:$0xf]
    %v56 = vld [vmem:[#allocation2 + $0x40] sm:$0xf]
    %v57 = vld [vmem:[#allocation2 + $0x44] sm:$0xf]
    %v58 = vld [vmem:[#allocation2 + $0x48] sm:$0xf]
    %v59 = vld [vmem:[#allocation2 + $0x4c] sm:$0xf]
    %v60 = vld [vmem:[#allocation2 + $0x50] sm:$0xf]
    %v61 = vld [vmem:[#allocation2 + $0x54] sm:$0xf]
    %v62 = vld [vmem:[#allocation2 + $0x58] sm:$0xf]
    %v63 = vld [vmem:[#allocation2 + $0x5c] sm:$0xf]
    %v64 = vld [vmem:[#allocation2 + $0x60] sm:$0xf]
    %v65 = vld [vmem:[#allocation2 + $0x64] sm:$0xf]
    %v66 = vld [vmem:[#allocation2 + $0x68] sm:$0xf]
    %v67 = vld [vmem:[#allocation2 + $0x6c] sm:$0xf]
    %v68 = vld [vmem:[#allocation2 + $0x70] sm:$0xf]
    %v69 = vld [vmem:[#allocation2 + $0x74] sm:$0xf]
    %v70 = vld [vmem:[#allocation2 + $0x78] sm:$0xf]
    %v71 = vld [vmem:[#allocation2 + $0x7c] sm:$0xf]
    %v72 = vld [vmem:[%s2] sm:$0x1]
    %v74 = vlaneseq
    %v75 = vshrl.u32 %v74, 7
    %v76 = vsub.s32 0, %v75
    %v77 = vrot.slane %v72, %v76
    %v111 = vunpack.c.l.b16 %v40
    %v112 = vunpack.c.l.b16 %v41
    %v113 = vunpack.c.l.b16 %v42
    %v114 = vunpack.c.l.b16 %v43
    %v115 = vunpack.c.l.b16 %v44
    %v116 = vunpack.c.l.b16 %v45
    %v117 = vunpack.c.l.b16 %v46
    %v118 = vunpack.c.l.b16 %v47
    %v119 = vunpack.c.l.b16 %v48
    %v120 = vunpack.c.l.b16 %v49
    %v121 = vunpack.c.l.b16 %v50
    %v122 = vunpack.c.l.b16 %v51
    %v123 = vunpack.c.l.b16 %v52
    %v124 = vunpack.c.l.b16 %v53
    %v125 = vunpack.c.l.b16 %v54
    %v126 = vunpack.c.l.b16 %v55
    %v127 = vunpack.c.l.b16 %v56
    %v128 = vunpack.c.l.b16 %v57
    %v129 = vunpack.c.l.b16 %v58
    %v130 = vunpack.c.l.b16 %v59
    %v131 = vunpack.c.l.b16 %v60
    %v132 = vunpack.c.l.b16 %v61
    %v133 = vunpack.c.l.b16 %v62
    %v134 = vunpack.c.l.b16 %v63
    %v135 = vunpack.c.l.b16 %v64
    %v136 = vunpack.c.l.b16 %v65
    %v137 = vunpack.c.l.b16 %v66
    %v138 = vunpack.c.l.b16 %v67
    %v139 = vunpack.c.l.b16 %v68
    %v140 = vunpack.c.l.b16 %v69
    %v141 = vunpack.c.l.b16 %v70
    %v142 = vunpack.c.l.b16 %v71
    %v143 = vpack.c.b16 %v112, %v111
    %v144 = vpack.c.b16 %v114, %v113
    %v145 = vpack.c.b16 %v116, %v115
    %v146 = vpack.c.b16 %v118, %v117
    %v147 = vpack.c.b16 %v120, %v119
    %v148 = vpack.c.b16 %v122, %v121
    %v149 = vpack.c.b16 %v124, %v123
    %v150 = vpack.c.b16 %v126, %v125
    %v151 = vpack.c.b16 %v128, %v127
    %v152 = vpack.c.b16 %v130, %v129
    %v153 = vpack.c.b16 %v132, %v131
    %v154 = vpack.c.b16 %v134, %v133
    %v155 = vpack.c.b16 %v136, %v135
    %v156 = vpack.c.b16 %v138, %v137
    %v157 = vpack.c.b16 %v140, %v139
    %v158 = vpack.c.b16 %v142, %v141
    %175 = vmatprep.subr.bf16.mxu0 0
    %176 = vmatpush1.bf16.msra.mxu0 %v143
    %177 = vmatprep.subr.bf16.mxu0 0
    %178 = vmatpush1.bf16.msra.mxu0 %v144
    %179 = vmatprep.subr.bf16.mxu0 0
    %180 = vmatpush1.bf16.msra.mxu0 %v145
    %181 = vmatprep.subr.bf16.mxu0 0
    %182 = vmatpush1.bf16.msra.mxu0 %v146
    %183 = vmatprep.subr.bf16.mxu0 0
    %184 = vmatpush1.bf16.msra.mxu0 %v147
    %185 = vmatprep.subr.bf16.mxu0 0
    %186 = vmatpush1.bf16.msra.mxu0 %v148
    %187 = vmatprep.subr.bf16.mxu0 0
    %188 = vmatpush1.bf16.msra.mxu0 %v149
    %189 = vmatprep.subr.bf16.mxu0 0
    %190 = vmatpush1.bf16.msra.mxu0 %v150
    %191 = vmatprep.subr.bf16.mxu0 0
    %192 = vmatpush1.bf16.msra.mxu0 %v151
    %193 = vmatprep.subr.bf16.mxu0 0
    %194 = vmatpush1.bf16.msra.mxu0 %v152
    %195 = vmatprep.subr.bf16.mxu0 0
    %196 = vmatpush1.bf16.msra.mxu0 %v153
    %197 = vmatprep.subr.bf16.mxu0 0
    %198 = vmatpush1.bf16.msra.mxu0 %v154
    %199 = vmatprep.subr.bf16.mxu0 0
    %200 = vmatpush1.bf16.msra.mxu0 %v155
    %201 = vmatprep.subr.bf16.mxu0 0
    %202 = vmatpush1.bf16.msra.mxu0 %v156
    %203 = vmatprep.subr.bf16.mxu0 0
    %204 = vmatpush1.bf16.msra.mxu0 %v157
    %205 = vmatprep.subr.bf16.mxu0 0
    %206 = vmatpush1.bf16.msra.mxu0 %v158
    %207 = vmatprep.mubr.bf16.mxu0 %v36
    %208 = vmatmul.mubr.bf16.gmra.mrb[0].mxu0 %v35
    %v209 = vpop.f32.mrb[0].mxu0
    %v210 = vadd.f32 %v77, %v209
    %v211 = vpop.f32.mrb[0].mxu0
    %v212 = vpop.f32.mrb[0].mxu0
    %v213 = vpop.f32.mrb[0].mxu0
    %214 = vdwg.mxu0
    %v215 = vpack.c.bf16 %v210, %v210
    %216 = vmatprep.subr.bf16.mxu0 0
    %217 = vmatpush1.bf16.xpose.msra.mxu0 %v39
    %218 = vmatprep.subr.bf16.mxu0 0
    %219 = vmatpush1.bf16.xpose.msra.mxu0 0
    %220 = vmatprep.subr.bf16.mxu0 0
    %221 = vmatpush1.bf16.xpose.msra.mxu0 0
    %222 = vmatprep.subr.bf16.mxu0 0
    %223 = vmatpush1.bf16.xpose.msra.mxu0 0
    %224 = vmatprep.subr.bf16.mxu0 0
    %225 = vmatpush1.bf16.xpose.msra.mxu0 0
    %226 = vmatprep.subr.bf16.mxu0 0
    %227 = vmatpush1.bf16.xpose.msra.mxu0 0
    %228 = vmatprep.subr.bf16.mxu0 0
    %229 = vmatpush1.bf16.xpose.msra.mxu0 0
    %230 = vmatprep.subr.bf16.mxu0 0
    %231 = vmatpush1.bf16.xpose.msra.mxu0 0
    %232 = vmatprep.subr.bf16.mxu0 0
    %233 = vmatpush1.bf16.xpose.msra.mxu0 0
    %234 = vmatprep.subr.bf16.mxu0 0
    %235 = vmatpush1.bf16.xpose.msra.mxu0 0
    %236 = vmatprep.subr.bf16.mxu0 0
    %237 = vmatpush1.bf16.xpose.msra.mxu0 0
    %238 = vmatprep.subr.bf16.mxu0 0
    %239 = vmatpush1.bf16.xpose.msra.mxu0 0
    %240 = vmatprep.subr.bf16.mxu0 0
    %241 = vmatpush1.bf16.xpose.msra.mxu0 0
    %242 = vmatprep.subr.bf16.mxu0 0
    %243 = vmatpush1.bf16.xpose.msra.mxu0 0
    %244 = vmatprep.subr.bf16.mxu0 0
    %245 = vmatpush1.bf16.xpose.msra.mxu0 0
    %246 = vmatprep.subr.bf16.mxu0 0
    %247 = vmatpush1.bf16.xpose.msra.mxu0 0
    %248 = vmatprep.mubr.bf16.mxu0 0
    %249 = vmatmul.mubr.bf16.gmra.mrb[0].mxu0 %v215
    %v250 = vpop.f32.mrb[0].mxu0
    %v251 = vadd.f32 0.0, %v250
    %v252 = vpop.f32.mrb[0].mxu0
    %v253 = vpop.f32.mrb[0].mxu0
    %v254 = vpop.f32.mrb[0].mxu0
    %255 = vdwg.mxu0
    %vm256 = vcmask 80896
    %v257 = vsel %vm256, %v251, -inf
    %258 = vmax.xlane.f32.xlu0 %v257
    %v259 = vpop.xlane.xlu0 %258
    %v260 = vsub.f32 %v251, %v259
    %v261 = vmul.f32 %v260, 1.442695
    %v262 = vpow.pop %v261
    %v263 = vpack.c.bf16 %v262, %v262
    %v265 = vsel %vm256, %v263, 0
    %vm267 = vcmask 1044480
    %v269 = vsel %vm267, %v39, 0
    %271 = vmatprep.subr.bf16.mxu0 0
    %272 = vmatpush1.bf16.msra.mxu0 %v269
    %273 = vmatprep.subr.bf16.mxu0 0
    %274 = vmatpush1.bf16.msra.mxu0 0
    %275 = vmatprep.subr.bf16.mxu0 0
    %276 = vmatpush1.bf16.msra.mxu0 0
    %277 = vmatprep.subr.bf16.mxu0 0
    %278 = vmatpush1.bf16.msra.mxu0 0
    %279 = vmatprep.subr.bf16.mxu0 0
    %280 = vmatpush1.bf16.msra.mxu0 0
    %281 = vmatprep.subr.bf16.mxu0 0
    %282 = vmatpush1.bf16.msra.mxu0 0
    %283 = vmatprep.subr.bf16.mxu0 0
    %284 = vmatpush1.bf16.msra.mxu0 0
    %285 = vmatprep.subr.bf16.mxu0 0
    %286 = vmatpush1.bf16.msra.mxu0 0
    %287 = vmatprep.subr.bf16.mxu0 0
    %288 = vmatpush1.bf16.msra.mxu0 0
    %289 = vmatprep.subr.bf16.mxu0 0
    %290 = vmatpush1.bf16.msra.mxu0 0
    %291 = vmatprep.subr.bf16.mxu0 0
    %292 = vmatpush1.bf16.msra.mxu0 0
    %293 = vmatprep.subr.bf16.mxu0 0
    %294 = vmatpush1.bf16.msra.mxu0 0
    %295 = vmatprep.subr.bf16.mxu0 0
    %296 = vmatpush1.bf16.msra.mxu0 0
    %297 = vmatprep.subr.bf16.mxu0 0
    %298 = vmatpush1.bf16.msra.mxu0 0
    %299 = vmatprep.subr.bf16.mxu0 0
    %300 = vmatpush1.bf16.msra.mxu0 0
    %301 = vmatprep.subr.bf16.mxu0 0
    %302 = vmatpush1.bf16.msra.mxu0 0
    %303 = vmatprep.mubr.bf16.mxu0 0
    %304 = vmatmul.mubr.bf16.gmra.mrb[0].mxu0 %v265
    %v305 = vpop.f32.mrb[0].mxu0
    %v306 = vadd.f32 0.0, %v305
    %v307 = vpop.f32.mrb[0].mxu0
    %v308 = vpop.f32.mrb[0].mxu0
    %v309 = vpop.f32.mrb[0].mxu0
    %310 = vdwg.mxu0
    %v311 = vsel %vm256, %v262, 0.0
    %312 = vadd.xlane.f32.xlu0 %v311
    %v313 = vpop.xlane.xlu0 %312
    %v314 = vrcp.pop %v313
    %v315 = vmul.f32 %v306, %v314
    %316 = vst [vmem:[#allocation5] sm:$0xff] %v315
    // Predicated region
    $region22: #{forward.1} parent=1 // pred_check
      _
    $region23: #{forward.1} parent=1 // pred_check_branch
      %318 = sbr.rel (0) target = $region25
    $region24: #{forward.1} parent=1 // pred_region
      %s320 = ssub.s32 128, 128
      %321 = vsyncadd [#allocation4], %s320
      %s323 = sshll.u32 [#allocation5], 4
      %s324 = int_to_ptr.vmem [resolvable:$true] %s323
      %326 = dma.vmem_to_hbm [thread:$0]  %s324, 128, %s4, [#allocation4]
    $region25: #{forward.1} parent=1 // pred_fallthru
      _
    // Predicated region
    $region26: #{forward.1} parent=1 // pred_check
      _
    $region27: #{forward.1} parent=1 // pred_check_branch
      %328 = sbr.rel (0) target = $region29
    $region28: #{forward.1} parent=1 // pred_region
      %329 = dma.done [#allocation4], 128
    $region29: #{forward.1} parent=1 // pred_fallthru
      _
    %330 = vsyncpa [#allocation3], 1
    %331 = vsyncpa [#allocation4], 1

</llo_original>
